<compile_context>
chip_gen: v6e
topology: v6e:2x2x1
jax: 0.10.0
libtpu: 0.0.40
codegen_flags: <defaults>
</compile_context>

<pallas_src>
import functools

import jax
import jax.numpy as jnp
from jax.experimental import pallas as pl
from jax.experimental.pallas import tpu as pltpu


_DEFAULT_TM = 4096    # batch tile; big enough to amortize ~0.35us per-step overhead


def _round_up(x: int, m: int) -> int:
    return ((x + m - 1) // m) * m


def _classifier_kernel(x_ref, w_ref, b_ref, o_ref, *, softmax):
    # x_ref: (TM, K)        f32   batch tile (cast to bf16 in-kernel, free under DMA)
    # w_ref: (K, N)         bf16  pre-transposed weight, VMEM-resident across grid
    # b_ref: (1, N)         f32
    # o_ref: (TM, N)        f32   narrow output tile (N = n_labels)
    x_bf = x_ref[...].astype(jnp.bfloat16)              # VPU cast, hidden under DMA
    logits = jnp.dot(x_bf, w_ref[...],
                     preferred_element_type=jnp.float32)  # MXU, f32 accumulate
    logits = logits + b_ref[...]                          # f32 bias add on the VPU

    if softmax:
        # Fused softmax epilogue over the real label columns (no padding).
        m = jnp.max(logits, axis=-1, keepdims=True)
        e = jnp.exp(logits - m)                            # EUP
        denom = jnp.sum(e, axis=-1, keepdims=True)         # XLU reduce
        logits = e / denom                                 # exact normalization

    o_ref[...] = logits.astype(o_ref.dtype)


def classifier_forward(x, weight, bias, *, softmax=False, reverse_gradients=False):
    """Pallas implementation of Classifier.forward.

    x:      (batch, n_input) float32
    weight: (n_labels, n_input) float32   (PyTorch Linear layout)
    bias:   (n_labels,) float32
    """
    # GradientReversal forward == identity.
    # TODO(synk): backward gradient reversal (-lambda * grad) is a backward-only
    # behaviour and is not represented in this forward-pass kernel.
    del reverse_gradients

    batch, n_input = x.shape
    n_labels = weight.shape[0]

    # Batch tile: large tiles pipeline well; cap to an 8-aligned batch so tiny
    # batches don't allocate a mostly-padded block.
    tm = min(_DEFAULT_TM, _round_up(batch, 8))
    if batch > 8:
        # Keep >= 2 grid steps when possible so v7x's second TensorCore gets work.
        tm = min(tm, max(8, _round_up(-(-batch // 2), 8)))

    grid = (pl.cdiv(batch, tm),)   # ragged last tile handled by Pallas (no jnp.pad)

    # One-time, tiny (n_labels x n_input ~ hundreds of bytes) wrapper transforms:
    # transpose to MXU-native (K, N) layout and cast the weight to bf16.
    w_t = weight.T.astype(jnp.bfloat16)                 # (n_input, n_labels)
    b2d = bias.reshape(1, n_labels).astype(jnp.float32)

    kernel = functools.partial(_classifier_kernel, softmax=softmax)

    out = pl.pallas_call(
        kernel,
        out_shape=jax.ShapeDtypeStruct((batch, n_labels), jnp.float32),
        grid_spec=pltpu.PrefetchScalarGridSpec(
            num_scalar_prefetch=0,
            grid=grid,
            in_specs=[
                # x: one batch tile per grid step (pipelined, f32 straight from HBM).
                pl.BlockSpec((tm, n_input), lambda i: (i, 0)),
                # weight / bias: same block every step -> stay VMEM-resident.
                pl.BlockSpec((n_input, n_labels), lambda i: (0, 0)),
                pl.BlockSpec((1, n_labels), lambda i: (0, 0)),
            ],
            out_specs=pl.BlockSpec((tm, n_labels), lambda i: (i, 0)),
        ),
        compiler_params=pltpu.CompilerParams(
            dimension_semantics=("parallel",),   # shard batch tiles across TCs (v7x)
        ),
    )(x, w_t, b2d)

    return out


if __name__ == "__main__":
    # Small shapes consistent with the module: n_input=32, n_labels=5, batch=8.
    batch, n_input, n_labels = 8, 32, 5

    key = jax.random.PRNGKey(0)
    kx, kw, kb = jax.random.split(key, 3)

    x = jax.random.normal(kx, (batch, n_input), dtype=jnp.float32)
    # Deterministic synthetic parameters (roughly PyTorch Linear init scale).
    bound = 1.0 / (n_input ** 0.5)
    weight = jax.random.uniform(kw, (n_labels, n_input), jnp.float32, -bound, bound)
    bias = jax.random.uniform(kb, (n_labels,), jnp.float32, -bound, bound)

    # Default path (softmax=False), matching Classifier's default ctor.
    y = classifier_forward(x, weight, bias)
    jax.block_until_ready(y)
    assert y.shape == (batch, n_labels)

    # References: exact-precision f32, and a bf16-input reference matching the
    # kernel's MXU precision (bf16 operands, f32 accumulation).
    y_ref_f32 = x @ weight.T + bias
    x_bf = x.astype(jnp.bfloat16).astype(jnp.float32)
    w_bf = weight.astype(jnp.bfloat16).astype(jnp.float32)
    y_ref_bf = x_bf @ w_bf.T + bias

    assert jnp.allclose(y, y_ref_bf, atol=1e-4, rtol=1e-4)   # matches kernel precision
    assert jnp.allclose(y, y_ref_f32, atol=3e-2, rtol=3e-2)  # bf16-vs-f32 tolerance

    # Fused-softmax path (ctor flag softmax=True).
    p = classifier_forward(x, weight, bias, softmax=True)
    jax.block_until_ready(p)
    p_ref = jax.nn.softmax(y_ref_bf, axis=-1)
    assert p.shape == (batch, n_labels)
    assert jnp.allclose(p, p_ref, atol=2e-2, rtol=2e-2)
    assert jnp.allclose(jnp.sum(p, axis=-1), 1.0, atol=1e-3)

    # A larger, ragged batch to exercise the cdiv grid / masked last tile.
    batch2 = 1000
    x2 = jax.random.normal(jax.random.PRNGKey(1), (batch2, n_input), jnp.float32)
    y2 = classifier_forward(x2, weight, bias)
    jax.block_until_ready(y2)
    y2_ref = (x2.astype(jnp.bfloat16).astype(jnp.float32) @ w_bf.T) + bias
    assert y2.shape == (batch2, n_labels)
    assert jnp.allclose(y2, y2_ref, atol=1e-3, rtol=1e-3)

    print("KERNEL_OK")
</pallas_src>

<mosaic_0001>
module attributes {stable_mosaic.version = 11 : i64} {
  func.func @_classifier_kernel(%arg0: i32, %arg1: memref<8x32xf32, #tpu.memory_space<vmem>>, %arg2: memref<32x5xbf16, #tpu.memory_space<vmem>>, %arg3: memref<1x5xf32, #tpu.memory_space<vmem>>, %arg4: memref<8x5xf32, #tpu.memory_space<vmem>>) attributes {dimension_semantics = [#tpu.dimension_semantics<parallel>], iteration_bounds = array<i64: 1>, scalar_prefetch = 0 : i64, scratch_operands = 0 : i64, tpu.core_type = #tpu.core_type<tc>, window_params = [{transform_indices = @transform_0, window_bounds = array<i64: 8, 32>}, {pipeline_mode = #tpu.pipeline_mode<synchronous>, transform_indices = @transform_1, window_bounds = array<i64: 32, 5>}, {pipeline_mode = #tpu.pipeline_mode<synchronous>, transform_indices = @transform_2, window_bounds = array<i64: 1, 5>}, {transform_indices = @transform_3, window_bounds = array<i64: 8, 5>}]} {
    %c0 = arith.constant 0 : index
    %c0_0 = arith.constant 0 : index
    %0 = vector.load %arg1[%c0, %c0_0] : memref<8x32xf32, #tpu.memory_space<vmem>>, vector<8x32xf32>
    %1 = arith.truncf %0 : vector<8x32xf32> to vector<8x32xbf16>
    %c0_1 = arith.constant 0 : index
    %c0_2 = arith.constant 0 : index
    %2 = vector.load %arg2[%c0_1, %c0_2] : memref<32x5xbf16, #tpu.memory_space<vmem>>, vector<32x5xbf16>
    %cst = arith.constant dense<0.000000e+00> : vector<8x5xf32>
    %3 = tpu.matmul %1, %2, %cst {dimension_numbers = #tpu.dot_dimension_numbers<[1], [0], [0], [1], [0, 0, 1, 1], [], []>} : vector<8x32xbf16>, vector<32x5xbf16>, vector<8x5xf32> -> vector<8x5xf32>
    %c0_3 = arith.constant 0 : index
    %c0_4 = arith.constant 0 : index
    %4 = vector.load %arg3[%c0_3, %c0_4] : memref<1x5xf32, #tpu.memory_space<vmem>>, vector<1x5xf32>
    %5 = vector.broadcast %4 : vector<1x5xf32> to vector<8x5xf32>
    %6 = arith.addf %3, %5 : vector<8x5xf32>
    %c0_5 = arith.constant 0 : index
    %c0_6 = arith.constant 0 : index
    %7 = vector.load %arg4[%c0_5, %c0_6] : memref<8x5xf32, #tpu.memory_space<vmem>>, vector<8x5xf32>
    tpu.vector_store %arg4[%c0_5, %c0_6], %6 {strides = array<i32>} : memref<8x5xf32, #tpu.memory_space<vmem>>, vector<8x5xf32>,
    return
  }
  func.func @transform_0(%arg0: i32) -> (i32, i32) {
    %c0_i32 = arith.constant 0 : i32
    %c0_i32_0 = arith.constant 0 : i32
    return %arg0, %c0_i32 : i32, i32
  }
  func.func @transform_1(%arg0: i32) -> (i32, i32) {
    %c0_i32 = arith.constant 0 : i32
    %c0_i32_0 = arith.constant 0 : i32
    %c0_i32_1 = arith.constant 0 : i32
    return %c0_i32, %c0_i32_0 : i32, i32
  }
  func.func @transform_2(%arg0: i32) -> (i32, i32) {
    %c0_i32 = arith.constant 0 : i32
    %c0_i32_0 = arith.constant 0 : i32
    %c0_i32_1 = arith.constant 0 : i32
    return %c0_i32, %c0_i32_0 : i32, i32
  }
  func.func @transform_3(%arg0: i32) -> (i32, i32) {
    %c0_i32 = arith.constant 0 : i32
    %c0_i32_0 = arith.constant 0 : i32
    return %arg0, %c0_i32 : i32, i32
  }
}

</mosaic_0001>

<llo_original>
// kernel: tpu_custom_call.1
$region0: #{tpu_custom_call.1}
  #allocation0 [shape = 'u32[]', space=smem, size = 0x4, offset = 0x4, fixed_abs, tag = 'smem constant byte address 0x4 - core index']
  #allocation1 [shape = 'u32[144,128]{1,0:T(1,128)}', space=vmem, size = 0x12000, scoped, tag = 'internal scratch']
  %s0 = inlined_call_operand.vmem [shape: f32[8,32], index: 0, kind: input, shape index: {}]
  %s1 = inlined_call_operand.vmem [shape: bf16[32,5], index: 1, kind: input, shape index: {}]
  %s2 = inlined_call_operand.vmem [shape: f32[1,5], index: 2, kind: input, shape index: {}]
  %s3 = inlined_call_operand.hbm [shape: f32[8,5], index: 3, kind: output, shape index: {}]
  %s4 = sld [smem:[#allocation0]]
  $region22: #{tpu_custom_call.1} parent=0
    _
  %s6 = ssub.s32 1, %s4
  %s7 = scalar_select 0, %s6, %s4
  $region1: #{tpu_custom_call.1} parent=0
    #allocation2 [shape = 'u8[4096]{0}', space=vmem, size = 0x1000, scoped, tag = 'output window, operand 0, single buffered']
    #allocation3 [shape = 's32[1]{0}', space=sflag, size = 0x4, scoped, tag = 'scoped memory for tpu_custom_call.1']
    %8 = vsyncpa [#allocation3], 0
    // Predicated region
    $region2: #{tpu_custom_call.1} parent=1 // pred_check
      _
    $region3: #{tpu_custom_call.1} parent=1 // pred_check_branch
      %10 = sbr.rel (0) target = $region5
    $region4: #{tpu_custom_call.1} parent=1 // pred_region
      _
    $region5: #{tpu_custom_call.1} parent=1 // pred_fallthru
      _
    // Predicated region
    $region6: #{tpu_custom_call.1} parent=1 // pred_check
      _
    $region7: #{tpu_custom_call.1} parent=1 // pred_check_branch
      %12 = sbr.rel (0) target = $region9
    $region8: #{tpu_custom_call.1} parent=1 // pred_region
      _
    $region9: #{tpu_custom_call.1} parent=1 // pred_fallthru
      _
    // Predicated region
    $region10: #{tpu_custom_call.1} parent=1 // pred_check
      _
    $region11: #{tpu_custom_call.1} parent=1 // pred_check_branch
      %14 = sbr.rel (0) target = $region13
    $region12: #{tpu_custom_call.1} parent=1 // pred_region
      _
    $region13: #{tpu_custom_call.1} parent=1 // pred_fallthru
      _
    %v16 = vld [vmem:[%s0] sm:$0xff]
    %v17 = vpack.c.bf16 %v16, %v16
    %v18 = vld [vmem:[%s1] sm:$0xf]
    %v19 = vld [vmem:[%s1 + $0x4] sm:$0xf]
    %v20 = vld [vmem:[%s1 + $0x8] sm:$0xf]
    %v21 = vld [vmem:[%s1 + $0xc] sm:$0xf]
    %v22 = vld [vmem:[%s2] sm:$0x1]
    %v24 = vlaneseq
    %v25 = vshrl.u32 %v24, 7
    %v26 = vsub.s32 0, %v25
    %v27 = vrot.slane %v22, %v26
    %v33 = vunpack.c.l.b16 %v18
    %v34 = vunpack.c.l.b16 %v19
    %v35 = vunpack.c.l.b16 %v20
    %v36 = vunpack.c.l.b16 %v21
    %v37 = vpack.c.b16 %v34, %v33
    %v38 = vpack.c.b16 %v36, %v35
    %vm41 = vcmask 261120
    %v43 = vsel %vm41, %v17, 0
    %45 = vmatprep.subr.bf16.mxu0 0
    %46 = vmatpush1.bf16.msra.mxu0 0
    %47 = vmatprep.subr.bf16.mxu0 0
    %48 = vmatpush1.bf16.msra.mxu0 0
    %49 = vmatprep.subr.bf16.mxu0 0
    %50 = vmatpush1.bf16.msra.mxu0 0
    %51 = vmatprep.subr.bf16.mxu0 0
    %52 = vmatpush1.bf16.msra.mxu0 0
    %53 = vmatprep.subr.bf16.mxu0 0
    %54 = vmatpush1.bf16.msra.mxu0 0
    %55 = vmatprep.subr.bf16.mxu0 0
    %56 = vmatpush1.bf16.msra.mxu0 0
    %57 = vmatprep.subr.bf16.mxu0 0
    %58 = vmatpush1.bf16.msra.mxu0 %v38
    %59 = vmatprep.subr.bf16.mxu0 0
    %60 = vmatpush1.bf16.msra.mxu0 %v37
    %61 = vmatprep.subr.bf16.mxu0 0
    %62 = vmatpush2.bf16.msra.mxu0 0
    %63 = vmatprep.subr.bf16.mxu0 0
    %64 = vmatpush2.bf16.msra.mxu0 0
    %65 = vmatprep.subr.bf16.mxu0 0
    %66 = vmatpush2.bf16.msra.mxu0 0
    %67 = vmatprep.subr.bf16.mxu0 0
    %68 = vmatpush2.bf16.msra.mxu0 0
    %69 = vmatprep.subr.bf16.mxu0 0
    %70 = vmatpush2.bf16.msra.mxu0 0
    %71 = vmatprep.subr.bf16.mxu0 0
    %72 = vmatpush2.bf16.msra.mxu0 0
    %73 = vmatprep.subr.bf16.mxu0 0
    %74 = vmatpush2.bf16.msra.mxu0 0
    %75 = vmatprep.subr.bf16.mxu0 0
    %76 = vmatpush2.bf16.msra.mxu0 0
    %77 = vmatprep.mubr.bf16.mxu0 0
    %78 = vmatmul.mubr.bf16.gmra.mxu0 %v43
    %v79 = vpop.f32.mrf.mxu0
    %v80 = vadd.f32 %v27, %v79
    %v81 = vpop.f32.mrf.mxu0
    %v82 = vpop.f32.mrf.mxu0
    %v83 = vpop.f32.mrf.mxu0
    %84 = vdwg.mxu0
    %vm85 = vcmask 39936
    %86 = vst.msk [vmem:[#allocation2] sm:$0xff] %vm85, %v80
    // Predicated region
    $region14: #{tpu_custom_call.1} parent=1 // pred_check
      _
    $region15: #{tpu_custom_call.1} parent=1 // pred_check_branch
      %88 = sbr.rel (0) target = $region17
    $region16: #{tpu_custom_call.1} parent=1 // pred_region
      %s90 = ssub.s32 128, 128
      %91 = vsyncadd [#allocation3], %s90
      %s93 = sshll.u32 [#allocation2], 4
      %s94 = int_to_ptr.vmem [resolvable:$true] %s93
      %96 = dma.vmem_to_hbm [thread:$0]  %s94, 128, %s3, [#allocation3]
    $region17: #{tpu_custom_call.1} parent=1 // pred_fallthru
      _
    // Predicated region
    $region18: #{tpu_custom_call.1} parent=1 // pred_check
      _
    $region19: #{tpu_custom_call.1} parent=1 // pred_check_branch
      %98 = sbr.rel (0) target = $region21
    $region20: #{tpu_custom_call.1} parent=1 // pred_region
      %99 = dma.done [#allocation3], 128
    $region21: #{tpu_custom_call.1} parent=1 // pred_fallthru
      _
    %100 = vsyncpa [#allocation3], 1

</llo_original>
